<compile_context>
chip_gen: v5e
topology: v5e:2x2
jax: 0.10.0
libtpu: 0.0.40
codegen_flags: <defaults>
</compile_context>

<pallas_src>
import functools

import jax
import jax.numpy as jnp
from jax.experimental import pallas as pl
from jax.experimental.pallas import tpu as pltpu

BN_EPS = 1e-5
LANE = 128
SUBLANE = 8


def _round_up(v, m):
    return (v + m - 1) // m * m


def _make_fused_mlp_kernel(num_hidden, n_actual, n_padded):
    """Build a kernel closure for `num_hidden` (Linear+ReLU+BN) layers + final Linear.

    Ref order: x, (w, b, gamma, beta) * num_hidden, w_last, b_last, out.
    """

    def kernel(*refs):
        x_ref = refs[0]
        o_ref = refs[-1]

        x = x_ref[...]                                   # (Np, Din_pad) f32
        inv_n = jnp.float32(1.0 / n_actual)

        # Row-validity mask only needed if the batch was padded; padded rows
        # must not contaminate the BatchNorm batch statistics.
        if n_padded != n_actual:
            row_ids = jax.lax.broadcasted_iota(jnp.int32, (n_padded, 1), 0)
            row_mask = (row_ids < n_actual).astype(jnp.float32)
        else:
            row_mask = None

        idx = 1
        for _ in range(num_hidden):
            w = refs[idx][...]          # (Din_pad, H_pad)
            b = refs[idx + 1][...]      # (1, H_pad)
            gamma = refs[idx + 2][...]  # (1, H_pad)
            beta = refs[idx + 3][...]   # (1, H_pad)
            idx += 4

            # Linear + ReLU (MXU matmul, f32 accumulate).
            h = jnp.dot(x, w, preferred_element_type=jnp.float32) + b
            h = jnp.maximum(h, 0.0)

            # One-pass BatchNorm batch stats: mean and E[h^2] over valid rows.
            hm = h if row_mask is None else h * row_mask
            mean = jnp.sum(hm, axis=0, keepdims=True) * inv_n        # (1, H)
            mean_sq = jnp.sum(hm * hm, axis=0, keepdims=True) * inv_n
            var = jnp.maximum(mean_sq - mean * mean, 0.0)            # biased
            inv = jax.lax.rsqrt(var + BN_EPS)                        # EUP

            # Fold BN affine into a single FMA over the (N, H) tile.
            scale = gamma * inv
            shift = beta - mean * scale
            x = h * scale + shift
            # TODO(synk): dropout p>0 would need pltpu.prng_seed /
            # prng_random_bits here; module default p=0.0 is the identity.

        w = refs[idx][...]
        b = refs[idx + 1][...]
        o_ref[...] = jnp.dot(x, w, preferred_element_type=jnp.float32) + b

    return kernel


def init_mlp_params(key, in_dim, hidden_dim, out_dim, num_layers):
    """Deterministic init mimicking PyTorch Linear / BatchNorm1d defaults.

    Linear weights are stored pre-transposed as (d_in, d_out); biases /
    gamma / beta are (1, d_out).
    """
    dims = [in_dim] + [hidden_dim] * (num_layers - 1) + [out_dim]
    params = []
    for i in range(num_layers):
        d_in, d_out = dims[i], dims[i + 1]
        key, kw, kb = jax.random.split(key, 3)
        bound = 1.0 / jnp.sqrt(d_in)
        w = jax.random.uniform(kw, (d_in, d_out), jnp.float32, -bound, bound)
        b = jax.random.uniform(kb, (1, d_out), jnp.float32, -bound, bound)
        if i < num_layers - 1:
            gamma = jnp.ones((1, d_out), jnp.float32)
            beta = jnp.zeros((1, d_out), jnp.float32)
            params.append((w, b, gamma, beta))
        else:
            params.append((w, b))
    return params


def _pad2(a, rows_to, cols_to):
    r, c = a.shape
    return jnp.pad(a, ((0, rows_to - r), (0, cols_to - c)))


@functools.partial(jax.jit, static_argnames=())
def mlp_forward(x, params):
    n, in_dim = x.shape
    hidden_params = params[:-1]
    w_last, b_last = params[-1]
    out_dim = w_last.shape[1]

    n_pad = _round_up(n, SUBLANE)
    in_pad = _round_up(in_dim, LANE)

    # Zero-pad everything to lane-dense (multiples of 128) / sublane-dense
    # (multiples of 8) shapes.  Zero padding keeps the math exact.
    flat_args = [_pad2(x, n_pad, in_pad)]
    prev_pad = in_pad
    for (w, b, gamma, beta) in hidden_params:
        d_in, d_out = w.shape
        d_out_pad = _round_up(d_out, LANE)
        flat_args += [
            _pad2(w, prev_pad, d_out_pad),
            _pad2(b, 1, d_out_pad),
            _pad2(gamma, 1, d_out_pad),
            _pad2(beta, 1, d_out_pad),
        ]
        prev_pad = d_out_pad
    out_pad = _round_up(out_dim, LANE)
    flat_args += [_pad2(w_last, prev_pad, out_pad), _pad2(b_last, 1, out_pad)]

    kernel = _make_fused_mlp_kernel(len(hidden_params), n, n_pad)
    vmem_spec = pl.BlockSpec(memory_space=pltpu.MemorySpace.VMEM)

    out_padded = pl.pallas_call(
        kernel,
        out_shape=jax.ShapeDtypeStruct((n_pad, out_pad), jnp.float32),
        in_specs=[vmem_spec] * len(flat_args),
        out_specs=vmem_spec,
        compiler_params=pltpu.CompilerParams(
            # Tiny working set; 32 MiB is within the scoped default on every
            # generation (and well under v7x's 64 MiB physical VMEM).
            vmem_limit_bytes=32 * 1024 * 1024,
        ),
    )(*flat_args)

    return out_padded[:n, :out_dim]


if __name__ == "__main__":
    in_dim, hidden_dim, out_dim, num_layers = 16, 32, 8, 3
    batch = 8

    key = jax.random.PRNGKey(0)
    key, kx = jax.random.split(key)
    x = jax.random.normal(kx, (batch, in_dim), jnp.float32)

    params = init_mlp_params(key, in_dim, hidden_dim, out_dim, num_layers)

    out = mlp_forward(x, params)
    jax.block_until_ready(out)
    assert out.shape == (batch, out_dim)
    assert bool(jnp.all(jnp.isfinite(out)))
    print("KERNEL_OK")
</pallas_src>

<mosaic_0001>
module attributes {stable_mosaic.version = 11 : i64} {
  func.func @kernel(%arg0: memref<8x128xf32, #tpu.memory_space<vmem>>, %arg1: memref<128x128xf32, #tpu.memory_space<vmem>>, %arg2: memref<1x128xf32, #tpu.memory_space<vmem>>, %arg3: memref<1x128xf32, #tpu.memory_space<vmem>>, %arg4: memref<1x128xf32, #tpu.memory_space<vmem>>, %arg5: memref<128x128xf32, #tpu.memory_space<vmem>>, %arg6: memref<1x128xf32, #tpu.memory_space<vmem>>, %arg7: memref<1x128xf32, #tpu.memory_space<vmem>>, %arg8: memref<1x128xf32, #tpu.memory_space<vmem>>, %arg9: memref<128x128xf32, #tpu.memory_space<vmem>>, %arg10: memref<1x128xf32, #tpu.memory_space<vmem>>, %arg11: memref<8x128xf32, #tpu.memory_space<vmem>>) attributes {dimension_semantics = [], scalar_prefetch = 0 : i64, scratch_operands = 0 : i64, tpu.core_type = #tpu.core_type<tc>} {
    %c0 = arith.constant 0 : index
    %c0_0 = arith.constant 0 : index
    %0 = vector.load %arg0[%c0, %c0_0] : memref<8x128xf32, #tpu.memory_space<vmem>>, vector<8x128xf32>
    %c0_1 = arith.constant 0 : index
    %c0_2 = arith.constant 0 : index
    %1 = vector.load %arg1[%c0_1, %c0_2] : memref<128x128xf32, #tpu.memory_space<vmem>>, vector<128x128xf32>
    %c0_3 = arith.constant 0 : index
    %c0_4 = arith.constant 0 : index
    %2 = vector.load %arg2[%c0_3, %c0_4] : memref<1x128xf32, #tpu.memory_space<vmem>>, vector<1x128xf32>
    %c0_5 = arith.constant 0 : index
    %c0_6 = arith.constant 0 : index
    %3 = vector.load %arg3[%c0_5, %c0_6] : memref<1x128xf32, #tpu.memory_space<vmem>>, vector<1x128xf32>
    %c0_7 = arith.constant 0 : index
    %c0_8 = arith.constant 0 : index
    %4 = vector.load %arg4[%c0_7, %c0_8] : memref<1x128xf32, #tpu.memory_space<vmem>>, vector<1x128xf32>
    %cst = arith.constant dense<0.000000e+00> : vector<8x128xf32>
    %5 = tpu.matmul %0, %1, %cst {dimension_numbers = #tpu.dot_dimension_numbers<[1], [0], [0], [1], [0, 0, 1, 1], [], []>} : vector<8x128xf32>, vector<128x128xf32>, vector<8x128xf32> -> vector<8x128xf32>
    %6 = vector.broadcast %2 : vector<1x128xf32> to vector<8x128xf32>
    %7 = arith.addf %5, %6 : vector<8x128xf32>
    %cst_9 = arith.constant 0.000000e+00 : f32
    %8 = vector.broadcast %cst_9 : f32 to vector<8x128xf32>
    %9 = arith.maximumf %7, %8 : vector<8x128xf32>
    %cst_10 = arith.constant dense<0.000000e+00> : vector<128xf32>
    %10 = vector.multi_reduction <add>, %9, %cst_10 [0] : vector<8x128xf32> to vector<128xf32>
    %11 = vector.shape_cast %10 : vector<128xf32> to vector<1x128xf32>
    %cst_11 = arith.constant 1.250000e-01 : f32
    %12 = vector.broadcast %cst_11 : f32 to vector<1x128xf32>
    %13 = arith.mulf %11, %12 : vector<1x128xf32>
    %14 = arith.mulf %9, %9 : vector<8x128xf32>
    %cst_12 = arith.constant dense<0.000000e+00> : vector<128xf32>
    %15 = vector.multi_reduction <add>, %14, %cst_12 [0] : vector<8x128xf32> to vector<128xf32>
    %16 = vector.shape_cast %15 : vector<128xf32> to vector<1x128xf32>
    %cst_13 = arith.constant 1.250000e-01 : f32
    %17 = vector.broadcast %cst_13 : f32 to vector<1x128xf32>
    %18 = arith.mulf %16, %17 : vector<1x128xf32>
    %19 = arith.mulf %13, %13 : vector<1x128xf32>
    %20 = arith.subf %18, %19 : vector<1x128xf32>
    %cst_14 = arith.constant 0.000000e+00 : f32
    %21 = vector.broadcast %cst_14 : f32 to vector<1x128xf32>
    %22 = arith.maximumf %20, %21 : vector<1x128xf32>
    %cst_15 = arith.constant 9.99999974E-6 : f32
    %23 = vector.broadcast %cst_15 : f32 to vector<1x128xf32>
    %24 = arith.addf %22, %23 : vector<1x128xf32>
    %25 = math.rsqrt %24 : vector<1x128xf32>
    %26 = arith.mulf %3, %25 : vector<1x128xf32>
    %27 = arith.mulf %13, %26 : vector<1x128xf32>
    %28 = arith.subf %4, %27 : vector<1x128xf32>
    %29 = vector.broadcast %26 : vector<1x128xf32> to vector<8x128xf32>
    %30 = arith.mulf %9, %29 : vector<8x128xf32>
    %31 = vector.broadcast %28 : vector<1x128xf32> to vector<8x128xf32>
    %32 = arith.addf %30, %31 : vector<8x128xf32>
    %c0_16 = arith.constant 0 : index
    %c0_17 = arith.constant 0 : index
    %33 = vector.load %arg5[%c0_16, %c0_17] : memref<128x128xf32, #tpu.memory_space<vmem>>, vector<128x128xf32>
    %c0_18 = arith.constant 0 : index
    %c0_19 = arith.constant 0 : index
    %34 = vector.load %arg6[%c0_18, %c0_19] : memref<1x128xf32, #tpu.memory_space<vmem>>, vector<1x128xf32>
    %c0_20 = arith.constant 0 : index
    %c0_21 = arith.constant 0 : index
    %35 = vector.load %arg7[%c0_20, %c0_21] : memref<1x128xf32, #tpu.memory_space<vmem>>, vector<1x128xf32>
    %c0_22 = arith.constant 0 : index
    %c0_23 = arith.constant 0 : index
    %36 = vector.load %arg8[%c0_22, %c0_23] : memref<1x128xf32, #tpu.memory_space<vmem>>, vector<1x128xf32>
    %cst_24 = arith.constant dense<0.000000e+00> : vector<8x128xf32>
    %37 = tpu.matmul %32, %33, %cst_24 {dimension_numbers = #tpu.dot_dimension_numbers<[1], [0], [0], [1], [0, 0, 1, 1], [], []>} : vector<8x128xf32>, vector<128x128xf32>, vector<8x128xf32> -> vector<8x128xf32>
    %38 = vector.broadcast %34 : vector<1x128xf32> to vector<8x128xf32>
    %39 = arith.addf %37, %38 : vector<8x128xf32>
    %cst_25 = arith.constant 0.000000e+00 : f32
    %40 = vector.broadcast %cst_25 : f32 to vector<8x128xf32>
    %41 = arith.maximumf %39, %40 : vector<8x128xf32>
    %cst_26 = arith.constant dense<0.000000e+00> : vector<128xf32>
    %42 = vector.multi_reduction <add>, %41, %cst_26 [0] : vector<8x128xf32> to vector<128xf32>
    %43 = vector.shape_cast %42 : vector<128xf32> to vector<1x128xf32>
    %cst_27 = arith.constant 1.250000e-01 : f32
    %44 = vector.broadcast %cst_27 : f32 to vector<1x128xf32>
    %45 = arith.mulf %43, %44 : vector<1x128xf32>
    %46 = arith.mulf %41, %41 : vector<8x128xf32>
    %cst_28 = arith.constant dense<0.000000e+00> : vector<128xf32>
    %47 = vector.multi_reduction <add>, %46, %cst_28 [0] : vector<8x128xf32> to vector<128xf32>
    %48 = vector.shape_cast %47 : vector<128xf32> to vector<1x128xf32>
    %cst_29 = arith.constant 1.250000e-01 : f32
    %49 = vector.broadcast %cst_29 : f32 to vector<1x128xf32>
    %50 = arith.mulf %48, %49 : vector<1x128xf32>
    %51 = arith.mulf %45, %45 : vector<1x128xf32>
    %52 = arith.subf %50, %51 : vector<1x128xf32>
    %cst_30 = arith.constant 0.000000e+00 : f32
    %53 = vector.broadcast %cst_30 : f32 to vector<1x128xf32>
    %54 = arith.maximumf %52, %53 : vector<1x128xf32>
    %cst_31 = arith.constant 9.99999974E-6 : f32
    %55 = vector.broadcast %cst_31 : f32 to vector<1x128xf32>
    %56 = arith.addf %54, %55 : vector<1x128xf32>
    %57 = math.rsqrt %56 : vector<1x128xf32>
    %58 = arith.mulf %35, %57 : vector<1x128xf32>
    %59 = arith.mulf %45, %58 : vector<1x128xf32>
    %60 = arith.subf %36, %59 : vector<1x128xf32>
    %61 = vector.broadcast %58 : vector<1x128xf32> to vector<8x128xf32>
    %62 = arith.mulf %41, %61 : vector<8x128xf32>
    %63 = vector.broadcast %60 : vector<1x128xf32> to vector<8x128xf32>
    %64 = arith.addf %62, %63 : vector<8x128xf32>
    %c0_32 = arith.constant 0 : index
    %c0_33 = arith.constant 0 : index
    %65 = vector.load %arg9[%c0_32, %c0_33] : memref<128x128xf32, #tpu.memory_space<vmem>>, vector<128x128xf32>
    %c0_34 = arith.constant 0 : index
    %c0_35 = arith.constant 0 : index
    %66 = vector.load %arg10[%c0_34, %c0_35] : memref<1x128xf32, #tpu.memory_space<vmem>>, vector<1x128xf32>
    %cst_36 = arith.constant dense<0.000000e+00> : vector<8x128xf32>
    %67 = tpu.matmul %64, %65, %cst_36 {dimension_numbers = #tpu.dot_dimension_numbers<[1], [0], [0], [1], [0, 0, 1, 1], [], []>} : vector<8x128xf32>, vector<128x128xf32>, vector<8x128xf32> -> vector<8x128xf32>
    %68 = vector.broadcast %66 : vector<1x128xf32> to vector<8x128xf32>
    %69 = arith.addf %67, %68 : vector<8x128xf32>
    %c0_37 = arith.constant 0 : index
    %c0_38 = arith.constant 0 : index
    %70 = vector.load %arg11[%c0_37, %c0_38] : memref<8x128xf32, #tpu.memory_space<vmem>>, vector<8x128xf32>
    tpu.vector_store %arg11[%c0_37, %c0_38], %69 {strides = array<i32>} : memref<8x128xf32, #tpu.memory_space<vmem>>, vector<8x128xf32>,
    return
  }
}

</mosaic_0001>

<llo_original>
// kernel: mlp_forward.1
$region0: #{mlp_forward.1}
  #allocation0 [shape = 'u32[]', space=smem, size = 0x4, offset = 0x4, fixed_abs, tag = 'smem constant byte address 0x4 - core index']
  #allocation1 [shape = 'u32[72,128]{1,0:T(1,128)}', space=vmem, size = 0x9000, scoped, tag = 'internal scratch']
  %s0 = inlined_call_operand.vmem [shape: f32[8,128], index: 0, kind: input, shape index: {}]
  %s1 = inlined_call_operand.vmem [shape: f32[128,128], index: 1, kind: input, shape index: {}]
  %s2 = inlined_call_operand.vmem [shape: f32[1,128], index: 2, kind: input, shape index: {}]
  %s3 = inlined_call_operand.vmem [shape: f32[1,128], index: 3, kind: input, shape index: {}]
  %s4 = inlined_call_operand.vmem [shape: f32[1,128], index: 4, kind: input, shape index: {}]
  %s5 = inlined_call_operand.vmem [shape: f32[128,128], index: 5, kind: input, shape index: {}]
  %s6 = inlined_call_operand.vmem [shape: f32[1,128], index: 6, kind: input, shape index: {}]
  %s7 = inlined_call_operand.vmem [shape: f32[1,128], index: 7, kind: input, shape index: {}]
  %s8 = inlined_call_operand.vmem [shape: f32[1,128], index: 8, kind: input, shape index: {}]
  %s9 = inlined_call_operand.vmem [shape: f32[128,128], index: 9, kind: input, shape index: {}]
  %s10 = inlined_call_operand.vmem [shape: f32[1,128], index: 10, kind: input, shape index: {}]
  %s11 = inlined_call_operand.hbm [shape: f32[8,128], index: 11, kind: output, shape index: {}]
  %s12 = sld [smem:[#allocation0]]
  $region54: #{mlp_forward.1} parent=0
    _
  %s14 = ssub.s32 1, %s12
  %s15 = scalar_select 0, %s14, %s12
  $region1: #{mlp_forward.1} parent=0
    #allocation2 [shape = 'u8[4096]{0}', space=vmem, size = 0x1000, scoped, tag = 'output window, operand 0, single buffered']
    #allocation3 [shape = 's32[1]{0}', space=sflag, size = 0x4, scoped, tag = 'scoped memory for mlp_forward.1']
    %16 = vsyncpa [#allocation3], 0
    // Predicated region
    $region2: #{mlp_forward.1} parent=1 // pred_check
      _
    $region3: #{mlp_forward.1} parent=1 // pred_check_branch
      %18 = sbr.rel (0) target = $region5
    $region4: #{mlp_forward.1} parent=1 // pred_region
      _
    $region5: #{mlp_forward.1} parent=1 // pred_fallthru
      _
    // Predicated region
    $region6: #{mlp_forward.1} parent=1 // pred_check
      _
    $region7: #{mlp_forward.1} parent=1 // pred_check_branch
      %20 = sbr.rel (0) target = $region9
    $region8: #{mlp_forward.1} parent=1 // pred_region
      _
    $region9: #{mlp_forward.1} parent=1 // pred_fallthru
      _
    // Predicated region
    $region10: #{mlp_forward.1} parent=1 // pred_check
      _
    $region11: #{mlp_forward.1} parent=1 // pred_check_branch
      %22 = sbr.rel (0) target = $region13
    $region12: #{mlp_forward.1} parent=1 // pred_region
      _
    $region13: #{mlp_forward.1} parent=1 // pred_fallthru
      _
    // Predicated region
    $region14: #{mlp_forward.1} parent=1 // pred_check
      _
    $region15: #{mlp_forward.1} parent=1 // pred_check_branch
      %24 = sbr.rel (0) target = $region17
    $region16: #{mlp_forward.1} parent=1 // pred_region
      _
    $region17: #{mlp_forward.1} parent=1 // pred_fallthru
      _
    // Predicated region
    $region18: #{mlp_forward.1} parent=1 // pred_check
      _
    $region19: #{mlp_forward.1} parent=1 // pred_check_branch
      %26 = sbr.rel (0) target = $region21
    $region20: #{mlp_forward.1} parent=1 // pred_region
      _
    $region21: #{mlp_forward.1} parent=1 // pred_fallthru
      _
    // Predicated region
    $region22: #{mlp_forward.1} parent=1 // pred_check
      _
    $region23: #{mlp_forward.1} parent=1 // pred_check_branch
      %28 = sbr.rel (0) target = $region25
    $region24: #{mlp_forward.1} parent=1 // pred_region
      _
    $region25: #{mlp_forward.1} parent=1 // pred_fallthru
      _
    // Predicated region
    $region26: #{mlp_forward.1} parent=1 // pred_check
      _
    $region27: #{mlp_forward.1} parent=1 // pred_check_branch
      %30 = sbr.rel (0) target = $region29
    $region28: #{mlp_forward.1} parent=1 // pred_region
      _
    $region29: #{mlp_forward.1} parent=1 // pred_fallthru
      _
    // Predicated region
    $region30: #{mlp_forward.1} parent=1 // pred_check
      _
    $region31: #{mlp_forward.1} parent=1 // pred_check_branch
      %32 = sbr.rel (0) target = $region33
    $region32: #{mlp_forward.1} parent=1 // pred_region
      _
    $region33: #{mlp_forward.1} parent=1 // pred_fallthru
      _
    // Predicated region
    $region34: #{mlp_forward.1} parent=1 // pred_check
      _
    $region35: #{mlp_forward.1} parent=1 // pred_check_branch
      %34 = sbr.rel (0) target = $region37
    $region36: #{mlp_forward.1} parent=1 // pred_region
      _
    $region37: #{mlp_forward.1} parent=1 // pred_fallthru
      _
    // Predicated region
    $region38: #{mlp_forward.1} parent=1 // pred_check
      _
    $region39: #{mlp_forward.1} parent=1 // pred_check_branch
      %36 = sbr.rel (0) target = $region41
    $region40: #{mlp_forward.1} parent=1 // pred_region
      _
    $region41: #{mlp_forward.1} parent=1 // pred_fallthru
      _
    // Predicated region
    $region42: #{mlp_forward.1} parent=1 // pred_check
      _
    $region43: #{mlp_forward.1} parent=1 // pred_check_branch
      %38 = sbr.rel (0) target = $region45
    $region44: #{mlp_forward.1} parent=1 // pred_region
      _
    $region45: #{mlp_forward.1} parent=1 // pred_fallthru
      _
    %v39 = vld [vmem:[%s0] sm:$0xff]
    %v40 = vld [vmem:[%s1] sm:$0xff]
    %v41 = vld [vmem:[%s1 + $0x8] sm:$0xff]
    %v42 = vld [vmem:[%s1 + $0x10] sm:$0xff]
    %v43 = vld [vmem:[%s1 + $0x18] sm:$0xff]
    %v44 = vld [vmem:[%s1 + $0x20] sm:$0xff]
    %v45 = vld [vmem:[%s1 + $0x28] sm:$0xff]
    %v46 = vld [vmem:[%s1 + $0x30] sm:$0xff]
    %v47 = vld [vmem:[%s1 + $0x38] sm:$0xff]
    %v48 = vld [vmem:[%s1 + $0x40] sm:$0xff]
    %v49 = vld [vmem:[%s1 + $0x48] sm:$0xff]
    %v50 = vld [vmem:[%s1 + $0x50] sm:$0xff]
    %v51 = vld [vmem:[%s1 + $0x58] sm:$0xff]
    %v52 = vld [vmem:[%s1 + $0x60] sm:$0xff]
    %v53 = vld [vmem:[%s1 + $0x68] sm:$0xff]
    %v54 = vld [vmem:[%s1 + $0x70] sm:$0xff]
    %v55 = vld [vmem:[%s1 + $0x78] sm:$0xff]
    %v56 = vld [vmem:[%s2] sm:$0x1]
    %v57 = vld [vmem:[%s3] sm:$0x1]
    %v58 = vld [vmem:[%s4] sm:$0x1]
    %v60 = vperm.slane %v56, 0
    %62 = vmatpush.msra.mxu0 %v55
    %63 = vmatpush.msra.mxu0 %v54
    %64 = vmatpush.msra.mxu0 %v53
    %65 = vmatpush.msra.mxu0 %v52
    %66 = vmatpush.msra.mxu0 %v51
    %67 = vmatpush.msra.mxu0 %v50
    %68 = vmatpush.msra.mxu0 %v49
    %69 = vmatpush.msra.mxu0 %v48
    %70 = vmatpush.msra.mxu0 %v47
    %71 = vmatpush.msra.mxu0 %v46
    %72 = vmatpush.msra.mxu0 %v45
    %73 = vmatpush.msra.mxu0 %v44
    %74 = vmatpush.msra.mxu0 %v43
    %75 = vmatpush.msra.mxu0 %v42
    %76 = vmatpush.msra.mxu0 %v41
    %77 = vmatpush.msra.mxu0 %v40
    %78 = vmatmul.f32.gmra.mxu0 %v39
    %v79 = vpop.f32.mrf.mxu0
    %v80 = vadd.f32 %v60, %v79
    %81 = vdwg.mxu0
    %v82 = vmax.f32 %v80, 0.0
    %v83 = vrot.slane %v82, 4
    %v84 = vadd.f32 %v82, %v83
    %v85 = vrot.slane %v84, 2
    %v86 = vadd.f32 %v84, %v85
    %v87 = vrot.slane %v86, 1
    %v88 = vadd.f32 %v86, %v87
    %v89 = vmul.f32 %v88, 0.125
    %v90 = vmul.f32 %v82, %v82
    %v91 = vrot.slane %v90, 4
    %v92 = vadd.f32 %v90, %v91
    %v93 = vrot.slane %v92, 2
    %v94 = vadd.f32 %v92, %v93
    %v95 = vrot.slane %v94, 1
    %v96 = vadd.f32 %v94, %v95
    %v97 = vmul.f32 %v96, 0.125
    %v98 = vmul.f32 %v89, %v89
    %v99 = vsub.f32 %v97, %v98
    %v100 = vmax.f32 %v99, 0.0
    %v101 = vadd.f32 %v100, 1e-05
    %v102 = vrsqrt.pop %v101
    %v103 = vmul.f32 %v102, %v101
    %v104 = vmul.f32 %v103, %v102
    %v105 = vmul.f32 0.5, %v104
    %v106 = vsub.f32 1.5, %v105
    %v107 = vmul.f32 %v102, %v106
    %vm108 = vweird.f32 %v101
    %vm109 = vweird.f32 %v102
    %vm110 = vmor %vm108, %vm109
    %v111 = vsel %vm110, %v102, %v107
    %v112 = vmul.f32 %v57, %v111
    %v113 = vmul.f32 %v89, %v112
    %v114 = vsub.f32 %v58, %v113
    %v116 = vperm.slane %v112, 0
    %v118 = vmul.f32 %v82, %v116
    %v120 = vperm.slane %v114, 0
    %v122 = vadd.f32 %v118, %v120
    %v123 = vld [vmem:[%s5] sm:$0xff]
    %v124 = vld [vmem:[%s5 + $0x8] sm:$0xff]
    %v125 = vld [vmem:[%s5 + $0x10] sm:$0xff]
    %v126 = vld [vmem:[%s5 + $0x18] sm:$0xff]
    %v127 = vld [vmem:[%s5 + $0x20] sm:$0xff]
    %v128 = vld [vmem:[%s5 + $0x28] sm:$0xff]
    %v129 = vld [vmem:[%s5 + $0x30] sm:$0xff]
    %v130 = vld [vmem:[%s5 + $0x38] sm:$0xff]
    %v131 = vld [vmem:[%s5 + $0x40] sm:$0xff]
    %v132 = vld [vmem:[%s5 + $0x48] sm:$0xff]
    %v133 = vld [vmem:[%s5 + $0x50] sm:$0xff]
    %v134 = vld [vmem:[%s5 + $0x58] sm:$0xff]
    %v135 = vld [vmem:[%s5 + $0x60] sm:$0xff]
    %v136 = vld [vmem:[%s5 + $0x68] sm:$0xff]
    %v137 = vld [vmem:[%s5 + $0x70] sm:$0xff]
    %v138 = vld [vmem:[%s5 + $0x78] sm:$0xff]
    %v139 = vld [vmem:[%s6] sm:$0x1]
    %v140 = vld [vmem:[%s7] sm:$0x1]
    %v141 = vld [vmem:[%s8] sm:$0x1]
    %v143 = vperm.slane %v139, 0
    %145 = vmatpush.msra.mxu0 %v138
    %146 = vmatpush.msra.mxu0 %v137
    %147 = vmatpush.msra.mxu0 %v136
    %148 = vmatpush.msra.mxu0 %v135
    %149 = vmatpush.msra.mxu0 %v134
    %150 = vmatpush.msra.mxu0 %v133
    %151 = vmatpush.msra.mxu0 %v132
    %152 = vmatpush.msra.mxu0 %v131
    %153 = vmatpush.msra.mxu0 %v130
    %154 = vmatpush.msra.mxu0 %v129
    %155 = vmatpush.msra.mxu0 %v128
    %156 = vmatpush.msra.mxu0 %v127
    %157 = vmatpush.msra.mxu0 %v126
    %158 = vmatpush.msra.mxu0 %v125
    %159 = vmatpush.msra.mxu0 %v124
    %160 = vmatpush.msra.mxu0 %v123
    %161 = vmatmul.f32.gmra.mxu0 %v122
    %v162 = vpop.f32.mrf.mxu0
    %v163 = vadd.f32 %v143, %v162
    %164 = vdwg.mxu0
    %v165 = vmax.f32 %v163, 0.0
    %v166 = vrot.slane %v165, 4
    %v167 = vadd.f32 %v165, %v166
    %v168 = vrot.slane %v167, 2
    %v169 = vadd.f32 %v167, %v168
    %v170 = vrot.slane %v169, 1
    %v171 = vadd.f32 %v169, %v170
    %v172 = vmul.f32 %v171, 0.125
    %v173 = vmul.f32 %v165, %v165
    %v174 = vrot.slane %v173, 4
    %v175 = vadd.f32 %v173, %v174
    %v176 = vrot.slane %v175, 2
    %v177 = vadd.f32 %v175, %v176
    %v178 = vrot.slane %v177, 1
    %v179 = vadd.f32 %v177, %v178
    %v180 = vmul.f32 %v179, 0.125
    %v181 = vmul.f32 %v172, %v172
    %v182 = vsub.f32 %v180, %v181
    %v183 = vmax.f32 %v182, 0.0
    %v184 = vadd.f32 %v183, 1e-05
    %v185 = vrsqrt.pop %v184
    %v186 = vmul.f32 %v185, %v184
    %v187 = vmul.f32 %v186, %v185
    %v188 = vmul.f32 0.5, %v187
    %v189 = vsub.f32 1.5, %v188
    %v190 = vmul.f32 %v185, %v189
    %vm191 = vweird.f32 %v184
    %vm192 = vweird.f32 %v185
    %vm193 = vmor %vm191, %vm192
    %v194 = vsel %vm193, %v185, %v190
    %v195 = vmul.f32 %v140, %v194
    %v196 = vmul.f32 %v172, %v195
    %v197 = vsub.f32 %v141, %v196
    %v199 = vperm.slane %v195, 0
    %v201 = vmul.f32 %v165, %v199
    %v203 = vperm.slane %v197, 0
    %v205 = vadd.f32 %v201, %v203
    %v206 = vld [vmem:[%s9] sm:$0xff]
    %v207 = vld [vmem:[%s9 + $0x8] sm:$0xff]
    %v208 = vld [vmem:[%s9 + $0x10] sm:$0xff]
    %v209 = vld [vmem:[%s9 + $0x18] sm:$0xff]
    %v210 = vld [vmem:[%s9 + $0x20] sm:$0xff]
    %v211 = vld [vmem:[%s9 + $0x28] sm:$0xff]
    %v212 = vld [vmem:[%s9 + $0x30] sm:$0xff]
    %v213 = vld [vmem:[%s9 + $0x38] sm:$0xff]
    %v214 = vld [vmem:[%s9 + $0x40] sm:$0xff]
    %v215 = vld [vmem:[%s9 + $0x48] sm:$0xff]
    %v216 = vld [vmem:[%s9 + $0x50] sm:$0xff]
    %v217 = vld [vmem:[%s9 + $0x58] sm:$0xff]
    %v218 = vld [vmem:[%s9 + $0x60] sm:$0xff]
    %v219 = vld [vmem:[%s9 + $0x68] sm:$0xff]
    %v220 = vld [vmem:[%s9 + $0x70] sm:$0xff]
    %v221 = vld [vmem:[%s9 + $0x78] sm:$0xff]
    %v222 = vld [vmem:[%s10] sm:$0x1]
    %v224 = vperm.slane %v222, 0
    %226 = vmatpush.msra.mxu0 %v221
    %227 = vmatpush.msra.mxu0 %v220
    %228 = vmatpush.msra.mxu0 %v219
    %229 = vmatpush.msra.mxu0 %v218
    %230 = vmatpush.msra.mxu0 %v217
    %231 = vmatpush.msra.mxu0 %v216
    %232 = vmatpush.msra.mxu0 %v215
    %233 = vmatpush.msra.mxu0 %v214
    %234 = vmatpush.msra.mxu0 %v213
    %235 = vmatpush.msra.mxu0 %v212
    %236 = vmatpush.msra.mxu0 %v211
    %237 = vmatpush.msra.mxu0 %v210
    %238 = vmatpush.msra.mxu0 %v209
    %239 = vmatpush.msra.mxu0 %v208
    %240 = vmatpush.msra.mxu0 %v207
    %241 = vmatpush.msra.mxu0 %v206
    %242 = vmatmul.f32.gmra.mxu0 %v205
    %v243 = vpop.f32.mrf.mxu0
    %v244 = vadd.f32 %v224, %v243
    %245 = vdwg.mxu0
    %246 = vst [vmem:[#allocation2] sm:$0xff] %v244
    // Predicated region
    $region46: #{mlp_forward.1} parent=1 // pred_check
      _
    $region47: #{mlp_forward.1} parent=1 // pred_check_branch
      %248 = sbr.rel (0) target = $region49
    $region48: #{mlp_forward.1} parent=1 // pred_region
      %250 = vsyncadd [#allocation3], 0
      %s252 = sshll.u32 [#allocation2], 4
      %s253 = int_to_ptr.vmem [resolvable:$true] %s252
      %s254 = sshll.u32 %s11, 4
      %s255 = int_to_ptr.hbm [resolvable:$true] %s254
      %257 = dma.vmem_to_hbm [thread:$0]  %s253, 128, %s255, [#allocation3]
    $region49: #{mlp_forward.1} parent=1 // pred_fallthru
      _
    // Predicated region
    $region50: #{mlp_forward.1} parent=1 // pred_check
      _
    $region51: #{mlp_forward.1} parent=1 // pred_check_branch
      %259 = sbr.rel (0) target = $region53
    $region52: #{mlp_forward.1} parent=1 // pred_region
      %261 = dma.done [#allocation3], 128
    $region53: #{mlp_forward.1} parent=1 // pred_fallthru
      _
    %262 = vsyncpa [#allocation3], 1

</llo_original>
